<compile_context>
chip_gen: v5e
topology: v5e:2x2
jax: 0.10.0
libtpu: 0.0.40
codegen_flags: <defaults>
</compile_context>

<pallas_src>
import jax
import jax.numpy as jnp
from jax.experimental import pallas as pl
from jax.experimental.pallas import tpu as pltpu

# ---- hyper-params implied by the PyTorch module (small, TPU-friendly demo) ----
D_MODEL = 128          # d_model
D_FF = 512             # d_ff
LN_EPS = 1e-5          # nn.LayerNorm default eps


# ---- fused kernel --------------------------------------------------------------
def ffn_kernel(x_ref, w1_ref, b1_ref, w2_ref, b2_ref, g_ref, beta_ref, out_ref):
    """Fused: relu(x@W1+b1)@W2+b2 + x, then LayerNorm.  x_ref is [TM, D] f32."""
    x = x_ref[...]                                                     # f32 [TM, D]

    # conv1 (1x1) == linear: bf16 operands, f32 MXU accumulation, f32 bias add.
    h = jnp.dot(x.astype(jnp.bfloat16), w1_ref[...],
                preferred_element_type=jnp.float32) + b1_ref[...]      # [TM, D_FF]
    # ReLU; keep the only large intermediate in bf16 (halves VMEM/vreg pressure).
    h = jnp.maximum(h, 0.0).astype(jnp.bfloat16)

    # conv2 (1x1) == linear.
    o = jnp.dot(h, w2_ref[...],
                preferred_element_type=jnp.float32) + b2_ref[...]      # [TM, D]

    # residual + LayerNorm (one-pass statistics), all in f32.
    y = o + x
    inv_d = 1.0 / y.shape[-1]
    mu = jnp.sum(y, axis=-1, keepdims=True) * inv_d
    var = jnp.sum(y * y, axis=-1, keepdims=True) * inv_d - mu * mu
    yn = (y - mu) * jax.lax.rsqrt(var + LN_EPS)
    out_ref[...] = (yn * g_ref[...] + beta_ref[...]).astype(out_ref.dtype)


# ---- pallas_call wrapper --------------------------------------------------------
def _const_spec(shape):
    """Whole-array block, same block every grid step, single-buffered."""
    n = len(shape)
    return pl.BlockSpec(shape, lambda *_: (0,) * n, pipeline_mode=pl.Buffered(1))


def _choose_row_tile(m, cap=512, min_tile=128):
    """Single slab for small M; otherwise a divisor of M (multiple of 8) <= cap,
    so the [tile, d_ff] intermediate stays bounded and no padding is needed."""
    if m <= cap:
        return m
    for t in range(cap, min_tile - 1, -8):
        if m % t == 0:
            return t
    return cap  # rare fallback (M not a multiple of 8): pad below


def poswise_ffn(x, params):
    """x: [B, S, D] f32 -> LayerNorm(conv2(relu(conv1(x))) + x), [B, S, D] f32."""
    B, S, D = x.shape
    M = B * S
    d_ff = params["w1"].shape[1]
    x2 = x.reshape(M, D)

    row_tile = _choose_row_tile(M)
    pad = (-M) % row_tile
    if pad:                                     # only hit when M has no good divisor
        x2 = jnp.pad(x2, ((0, pad), (0, 0)))
    Mp = M + pad
    n_steps = Mp // row_tile

    weight_bytes = (D * d_ff + d_ff * D) * 2    # bf16 weights, fetched once per core
    cost = pl.CostEstimate(
        flops=2 * Mp * D * d_ff * 2,
        transcendentals=Mp,                                      # one rsqrt per row
        bytes_accessed=weight_bytes * min(n_steps, 2)            # <=2 cores fetch W
                       + 2 * Mp * D * 4                          # x in, out
                       + (d_ff + 3 * D) * 4,                     # biases + LN params
    )

    # VMEM budget: resident weights + double-buffered x/out tiles + f32 dot result
    # + bf16 ReLU slab + small params, with slack; stays well under v7x's 64 MiB.
    vmem_budget = (weight_bytes
                   + 2 * 2 * row_tile * D * 4
                   + row_tile * d_ff * (4 + 2)
                   + (d_ff + 3 * D) * 4 * 2)
    vmem_limit = min(max(int(vmem_budget * 1.5) + (4 << 20), 32 << 20), 48 << 20)

    out = pl.pallas_call(
        ffn_kernel,
        out_shape=jax.ShapeDtypeStruct((Mp, D), jnp.float32),
        grid=(n_steps,),
        in_specs=[
            pl.BlockSpec((row_tile, D), lambda i: (i, 0)),   # x row block
            _const_spec((D, d_ff)),                          # W1 (bf16)
            _const_spec((1, d_ff)),                          # b1 (f32)
            _const_spec((d_ff, D)),                          # W2 (bf16)
            _const_spec((1, D)),                             # b2 (f32)
            _const_spec((1, D)),                             # LN gamma
            _const_spec((1, D)),                             # LN beta
        ],
        out_specs=pl.BlockSpec((row_tile, D), lambda i: (i, 0)),
        compiler_params=pltpu.CompilerParams(
            dimension_semantics=("parallel",),
            vmem_limit_bytes=vmem_limit),
        cost_estimate=cost,
    )(x2, params["w1"], params["b1"], params["w2"], params["b2"],
      params["ln_g"], params["ln_b"])

    if pad:
        out = out[:M]
    return out.reshape(B, S, D)


# ---- pure-JAX reference (for correctness check) ----------------------------------
def ffn_reference(x, params):
    w1 = params["w1"].astype(jnp.float32)
    w2 = params["w2"].astype(jnp.float32)
    h = jnp.maximum(jnp.einsum("bsd,df->bsf", x, w1) + params["b1"], 0.0)
    o = jnp.einsum("bsf,fd->bsd", h, w2) + params["b2"]
    y = o + x
    mu = y.mean(-1, keepdims=True)
    var = ((y - mu) ** 2).mean(-1, keepdims=True)
    return (y - mu) / jnp.sqrt(var + LN_EPS) * params["ln_g"] + params["ln_b"]


# ---- entry point ------------------------------------------------------------------
if __name__ == "__main__":
    B, S = 2, 16
    key = jax.random.PRNGKey(0)
    k_in, kw1, kb1, kw2, kb2 = jax.random.split(key, 5)

    inputs = jax.random.normal(k_in, (B, S, D_MODEL), jnp.float32)

    params = dict(
        # Conv1d(d_model, d_ff, k=1).weight[:, :, 0].T  ==> stored [in, out], bf16.
        w1=(jax.random.normal(kw1, (D_MODEL, D_FF), jnp.float32) * 0.02
            ).astype(jnp.bfloat16),
        b1=jax.random.normal(kb1, (1, D_FF), jnp.float32) * 0.02,
        w2=(jax.random.normal(kw2, (D_FF, D_MODEL), jnp.float32) * 0.02
            ).astype(jnp.bfloat16),
        b2=jax.random.normal(kb2, (1, D_MODEL), jnp.float32) * 0.02,
        ln_g=jnp.ones((1, D_MODEL), jnp.float32),
        ln_b=jnp.zeros((1, D_MODEL), jnp.float32),
    )

    fwd = jax.jit(poswise_ffn)
    out = fwd(inputs, params)
    jax.block_until_ready(out)

    ref = ffn_reference(inputs, params)
    assert out.shape == (B, S, D_MODEL)
    assert bool(jnp.all(jnp.isfinite(out)))
    assert bool(jnp.allclose(out, ref, rtol=5e-2, atol=5e-2)), \
        f"max abs err {float(jnp.max(jnp.abs(out - ref)))}"
    print("KERNEL_OK")
</pallas_src>

<mosaic_0001>
module attributes {stable_mosaic.version = 11 : i64} {
  func.func @ffn_kernel(%arg0: i32, %arg1: memref<32x128xf32, #tpu.memory_space<vmem>>, %arg2: memref<128x512xbf16, #tpu.memory_space<vmem>>, %arg3: memref<1x512xf32, #tpu.memory_space<vmem>>, %arg4: memref<512x128xbf16, #tpu.memory_space<vmem>>, %arg5: memref<1x128xf32, #tpu.memory_space<vmem>>, %arg6: memref<1x128xf32, #tpu.memory_space<vmem>>, %arg7: memref<1x128xf32, #tpu.memory_space<vmem>>, %arg8: memref<32x128xf32, #tpu.memory_space<vmem>>) attributes {dimension_semantics = [#tpu.dimension_semantics<parallel>], iteration_bounds = array<i64: 1>, scalar_prefetch = 0 : i64, scratch_operands = 0 : i64, tpu.core_type = #tpu.core_type<tc>, window_params = [{transform_indices = @transform_0, window_bounds = array<i64: 32, 128>}, {pipeline_mode = #tpu.pipeline_mode<synchronous>, transform_indices = @transform_1, window_bounds = array<i64: 128, 512>}, {pipeline_mode = #tpu.pipeline_mode<synchronous>, transform_indices = @transform_2, window_bounds = array<i64: 1, 512>}, {pipeline_mode = #tpu.pipeline_mode<synchronous>, transform_indices = @transform_3, window_bounds = array<i64: 512, 128>}, {pipeline_mode = #tpu.pipeline_mode<synchronous>, transform_indices = @transform_4, window_bounds = array<i64: 1, 128>}, {pipeline_mode = #tpu.pipeline_mode<synchronous>, transform_indices = @transform_5, window_bounds = array<i64: 1, 128>}, {pipeline_mode = #tpu.pipeline_mode<synchronous>, transform_indices = @transform_6, window_bounds = array<i64: 1, 128>}, {transform_indices = @transform_7, window_bounds = array<i64: 32, 128>}]} {
    %c0 = arith.constant 0 : index
    %c0_0 = arith.constant 0 : index
    %0 = vector.load %arg1[%c0, %c0_0] : memref<32x128xf32, #tpu.memory_space<vmem>>, vector<32x128xf32>
    %1 = arith.truncf %0 : vector<32x128xf32> to vector<32x128xbf16>
    %c0_1 = arith.constant 0 : index
    %c0_2 = arith.constant 0 : index
    %2 = vector.load %arg2[%c0_1, %c0_2] : memref<128x512xbf16, #tpu.memory_space<vmem>>, vector<128x512xbf16>
    %cst = arith.constant dense<0.000000e+00> : vector<32x512xf32>
    %3 = tpu.matmul %1, %2, %cst {dimension_numbers = #tpu.dot_dimension_numbers<[1], [0], [0], [1], [0, 0, 1, 1], [], []>} : vector<32x128xbf16>, vector<128x512xbf16>, vector<32x512xf32> -> vector<32x512xf32>
    %c0_3 = arith.constant 0 : index
    %c0_4 = arith.constant 0 : index
    %4 = vector.load %arg3[%c0_3, %c0_4] : memref<1x512xf32, #tpu.memory_space<vmem>>, vector<1x512xf32>
    %5 = vector.broadcast %4 : vector<1x512xf32> to vector<32x512xf32>
    %6 = arith.addf %3, %5 : vector<32x512xf32>
    %cst_5 = arith.constant 0.000000e+00 : f32
    %7 = vector.broadcast %cst_5 : f32 to vector<32x512xf32>
    %8 = arith.maximumf %6, %7 : vector<32x512xf32>
    %9 = arith.truncf %8 : vector<32x512xf32> to vector<32x512xbf16>
    %c0_6 = arith.constant 0 : index
    %c0_7 = arith.constant 0 : index
    %10 = vector.load %arg4[%c0_6, %c0_7] : memref<512x128xbf16, #tpu.memory_space<vmem>>, vector<512x128xbf16>
    %cst_8 = arith.constant dense<0.000000e+00> : vector<32x128xf32>
    %11 = tpu.matmul %9, %10, %cst_8 {dimension_numbers = #tpu.dot_dimension_numbers<[1], [0], [0], [1], [0, 0, 1, 1], [], []>} : vector<32x512xbf16>, vector<512x128xbf16>, vector<32x128xf32> -> vector<32x128xf32>
    %c0_9 = arith.constant 0 : index
    %c0_10 = arith.constant 0 : index
    %12 = vector.load %arg5[%c0_9, %c0_10] : memref<1x128xf32, #tpu.memory_space<vmem>>, vector<1x128xf32>
    %13 = vector.broadcast %12 : vector<1x128xf32> to vector<32x128xf32>
    %14 = arith.addf %11, %13 : vector<32x128xf32>
    %15 = arith.addf %14, %0 : vector<32x128xf32>
    %cst_11 = arith.constant dense<0.000000e+00> : vector<32xf32>
    %16 = vector.multi_reduction <add>, %15, %cst_11 [1] : vector<32x128xf32> to vector<32xf32>
    %17 = vector.shape_cast %16 : vector<32xf32> to vector<32x1xf32>
    %cst_12 = arith.constant 7.812500e-03 : f32
    %18 = vector.broadcast %cst_12 : f32 to vector<32x1xf32>
    %19 = arith.mulf %17, %18 : vector<32x1xf32>
    %20 = arith.mulf %15, %15 : vector<32x128xf32>
    %cst_13 = arith.constant dense<0.000000e+00> : vector<32xf32>
    %21 = vector.multi_reduction <add>, %20, %cst_13 [1] : vector<32x128xf32> to vector<32xf32>
    %22 = vector.shape_cast %21 : vector<32xf32> to vector<32x1xf32>
    %cst_14 = arith.constant 7.812500e-03 : f32
    %23 = vector.broadcast %cst_14 : f32 to vector<32x1xf32>
    %24 = arith.mulf %22, %23 : vector<32x1xf32>
    %25 = arith.mulf %19, %19 : vector<32x1xf32>
    %26 = arith.subf %24, %25 : vector<32x1xf32>
    %27 = vector.broadcast %19 : vector<32x1xf32> to vector<32x128xf32>
    %28 = arith.subf %15, %27 : vector<32x128xf32>
    %cst_15 = arith.constant 9.99999974E-6 : f32
    %29 = vector.broadcast %cst_15 : f32 to vector<32x1xf32>
    %30 = arith.addf %26, %29 : vector<32x1xf32>
    %31 = math.rsqrt %30 : vector<32x1xf32>
    %32 = vector.broadcast %31 : vector<32x1xf32> to vector<32x128xf32>
    %33 = arith.mulf %28, %32 : vector<32x128xf32>
    %c0_16 = arith.constant 0 : index
    %c0_17 = arith.constant 0 : index
    %34 = vector.load %arg6[%c0_16, %c0_17] : memref<1x128xf32, #tpu.memory_space<vmem>>, vector<1x128xf32>
    %35 = vector.broadcast %34 : vector<1x128xf32> to vector<32x128xf32>
    %36 = arith.mulf %33, %35 : vector<32x128xf32>
    %c0_18 = arith.constant 0 : index
    %c0_19 = arith.constant 0 : index
    %37 = vector.load %arg7[%c0_18, %c0_19] : memref<1x128xf32, #tpu.memory_space<vmem>>, vector<1x128xf32>
    %38 = vector.broadcast %37 : vector<1x128xf32> to vector<32x128xf32>
    %39 = arith.addf %36, %38 : vector<32x128xf32>
    %c0_20 = arith.constant 0 : index
    %c0_21 = arith.constant 0 : index
    %40 = vector.load %arg8[%c0_20, %c0_21] : memref<32x128xf32, #tpu.memory_space<vmem>>, vector<32x128xf32>
    tpu.vector_store %arg8[%c0_20, %c0_21], %39 {strides = array<i32>} : memref<32x128xf32, #tpu.memory_space<vmem>>, vector<32x128xf32>,
    return
  }
  func.func @transform_0(%arg0: i32) -> (i32, i32) {
    %c0_i32 = arith.constant 0 : i32
    %c0_i32_0 = arith.constant 0 : i32
    return %arg0, %c0_i32 : i32, i32
  }
  func.func @transform_1(%arg0: i32) -> (i32, i32) {
    %c0_i32 = arith.constant 0 : i32
    %c0_i32_0 = arith.constant 0 : i32
    %c0_i32_1 = arith.constant 0 : i32
    return %c0_i32, %c0_i32_0 : i32, i32
  }
  func.func @transform_2(%arg0: i32) -> (i32, i32) {
    %c0_i32 = arith.constant 0 : i32
    %c0_i32_0 = arith.constant 0 : i32
    %c0_i32_1 = arith.constant 0 : i32
    return %c0_i32, %c0_i32_0 : i32, i32
  }
  func.func @transform_3(%arg0: i32) -> (i32, i32) {
    %c0_i32 = arith.constant 0 : i32
    %c0_i32_0 = arith.constant 0 : i32
    %c0_i32_1 = arith.constant 0 : i32
    return %c0_i32, %c0_i32_0 : i32, i32
  }
  func.func @transform_4(%arg0: i32) -> (i32, i32) {
    %c0_i32 = arith.constant 0 : i32
    %c0_i32_0 = arith.constant 0 : i32
    %c0_i32_1 = arith.constant 0 : i32
    return %c0_i32, %c0_i32_0 : i32, i32
  }
  func.func @transform_5(%arg0: i32) -> (i32, i32) {
    %c0_i32 = arith.constant 0 : i32
    %c0_i32_0 = arith.constant 0 : i32
    %c0_i32_1 = arith.constant 0 : i32
    return %c0_i32, %c0_i32_0 : i32, i32
  }
  func.func @transform_6(%arg0: i32) -> (i32, i32) {
    %c0_i32 = arith.constant 0 : i32
    %c0_i32_0 = arith.constant 0 : i32
    %c0_i32_1 = arith.constant 0 : i32
    return %c0_i32, %c0_i32_0 : i32, i32
  }
  func.func @transform_7(%arg0: i32) -> (i32, i32) {
    %c0_i32 = arith.constant 0 : i32
    %c0_i32_0 = arith.constant 0 : i32
    return %arg0, %c0_i32 : i32, i32
  }
}

</mosaic_0001>

<llo_original>
// kernel: poswise_ffn.1
$region0: #{poswise_ffn.1}
  #allocation0 [shape = 'u32[]', space=smem, size = 0x4, offset = 0x4, fixed_abs, tag = 'smem constant byte address 0x4 - core index']
  #allocation1 [shape = 'u32[72,128]{1,0:T(1,128)}', space=vmem, size = 0x9000, scoped, tag = 'internal scratch']
  %s0 = inlined_call_operand.hbm [shape: f32[32,128], index: 0, kind: input, shape index: {}]
  %s1 = inlined_call_operand.hbm [shape: bf16[128,512], index: 1, kind: input, shape index: {}]
  %s2 = inlined_call_operand.hbm [shape: f32[1,512], index: 2, kind: input, shape index: {}]
  %s3 = inlined_call_operand.hbm [shape: bf16[512,128], index: 3, kind: input, shape index: {}]
  %s4 = inlined_call_operand.vmem [shape: f32[1,128], index: 4, kind: input, shape index: {}]
  %s5 = inlined_call_operand.vmem [shape: f32[1,128], index: 5, kind: input, shape index: {}]
  %s6 = inlined_call_operand.vmem [shape: f32[1,128], index: 6, kind: input, shape index: {}]
  %s7 = inlined_call_operand.hbm [shape: f32[32,128], index: 7, kind: output, shape index: {}]
  %s8 = sld [smem:[#allocation0]]
  $region54: #{poswise_ffn.1} parent=0
    _
  %s10 = ssub.s32 1, %s8
  %s11 = scalar_select 0, %s10, %s8
  $region1: #{poswise_ffn.1} parent=0
    #allocation2 [shape = 'u8[16384]{0}', space=vmem, size = 0x4000, scoped, tag = 'input window, operand 0, single buffered']
    #allocation3 [shape = 's32[1]{0}', space=sflag, size = 0x4, scoped, tag = 'scoped memory for poswise_ffn.1']
    #allocation4 [shape = 's32[1]{0}', space=sflag, size = 0x4, scoped, tag = 'scoped memory for poswise_ffn.1']
    #allocation5 [shape = 'u8[131072]{0}', space=vmem, size = 0x20000, scoped, tag = 'input window, operand 1, single buffered']
    #allocation6 [shape = 's32[1]{0}', space=sflag, size = 0x4, scoped, tag = 'scoped memory for poswise_ffn.1']
    #allocation7 [shape = 'u8[2048]{0}', space=vmem, size = 0x800, scoped, tag = 'input window, operand 2, single buffered']
    #allocation8 [shape = 'u8[131072]{0}', space=vmem, size = 0x20000, scoped, tag = 'input window, operand 3, single buffered']
    #allocation9 [shape = 's32[1]{0}', space=sflag, size = 0x4, scoped, tag = 'scoped memory for poswise_ffn.1']
    #allocation10 [shape = 'u8[16384]{0}', space=vmem, size = 0x4000, scoped, tag = 'output window, operand 0, single buffered']
    %12 = vsyncpa [#allocation3], 0
    %13 = vsyncpa [#allocation6], 0
    %14 = vsyncpa [#allocation9], 0
    %15 = vsyncpa [#allocation4], 0
    // Predicated region
    $region2: #{poswise_ffn.1} parent=1 // pred_check
      _
    $region3: #{poswise_ffn.1} parent=1 // pred_check_branch
      %17 = sbr.rel (0) target = $region5
    $region4: #{poswise_ffn.1} parent=1 // pred_region
      %19 = vsyncadd [#allocation3], 0
      %s20 = sshll.u32 %s0, 4
      %s21 = int_to_ptr.hbm [resolvable:$true] %s20
      %s22 = sshll.u32 [#allocation2], 4
      %s23 = int_to_ptr.vmem [resolvable:$true] %s22
      %28 = dma.hbm_to_vmem [thread:$0]  %s21, 512, %s23, [#allocation3], 128, 128, 8
    $region5: #{poswise_ffn.1} parent=1 // pred_fallthru
      _
    // Predicated region
    $region6: #{poswise_ffn.1} parent=1 // pred_check
      _
    $region7: #{poswise_ffn.1} parent=1 // pred_check_branch
      %30 = sbr.rel (0) target = $region9
    $region8: #{poswise_ffn.1} parent=1 // pred_region
      %32 = vsyncadd [#allocation6], 0
      %s33 = sshll.u32 %s1, 4
      %s34 = int_to_ptr.hbm [resolvable:$true] %s33
      %s35 = sshll.u32 [#allocation5], 4
      %s36 = int_to_ptr.vmem [resolvable:$true] %s35
      %41 = dma.hbm_to_vmem [thread:$0]  %s34, 4096, %s36, [#allocation6], 256, 256, 16
    $region9: #{poswise_ffn.1} parent=1 // pred_fallthru
      _
    // Predicated region
    $region10: #{poswise_ffn.1} parent=1 // pred_check
      _
    $region11: #{poswise_ffn.1} parent=1 // pred_check_branch
      %43 = sbr.rel (0) target = $region13
    $region12: #{poswise_ffn.1} parent=1 // pred_region
      %45 = vsyncadd [#allocation6], 0
      %s47 = sshll.u32 %s2, 4
      %s48 = int_to_ptr.hbm [resolvable:$true] %s47
      %s49 = sshll.u32 [#allocation7], 4
      %s50 = int_to_ptr.vmem [resolvable:$true] %s49
      %52 = dma.hbm_to_vmem [thread:$0]  %s48, 64, %s50, [#allocation6]
    $region13: #{poswise_ffn.1} parent=1 // pred_fallthru
      _
    // Predicated region
    $region14: #{poswise_ffn.1} parent=1 // pred_check
      _
    $region15: #{poswise_ffn.1} parent=1 // pred_check_branch
      %54 = sbr.rel (0) target = $region17
    $region16: #{poswise_ffn.1} parent=1 // pred_region
      %56 = vsyncadd [#allocation9], 0
      %s57 = sshll.u32 %s3, 4
      %s58 = int_to_ptr.hbm [resolvable:$true] %s57
      %s59 = sshll.u32 [#allocation8], 4
      %s60 = int_to_ptr.vmem [resolvable:$true] %s59
      %65 = dma.hbm_to_vmem [thread:$0]  %s58, 4096, %s60, [#allocation9], 64, 64, 4
    $region17: #{poswise_ffn.1} parent=1 // pred_fallthru
      _
    // Predicated region
    $region18: #{poswise_ffn.1} parent=1 // pred_check
      _
    $region19: #{poswise_ffn.1} parent=1 // pred_check_branch
      %67 = sbr.rel (0) target = $region21
    $region20: #{poswise_ffn.1} parent=1 // pred_region
      _
    $region21: #{poswise_ffn.1} parent=1 // pred_fallthru
      _
    // Predicated region
    $region22: #{poswise_ffn.1} parent=1 // pred_check
      _
    $region23: #{poswise_ffn.1} parent=1 // pred_check_branch
      %69 = sbr.rel (0) target = $region25
    $region24: #{poswise_ffn.1} parent=1 // pred_region
      _
    $region25: #{poswise_ffn.1} parent=1 // pred_fallthru
      _
    // Predicated region
    $region26: #{poswise_ffn.1} parent=1 // pred_check
      _
    $region27: #{poswise_ffn.1} parent=1 // pred_check_branch
      %71 = sbr.rel (0) target = $region29
    $region28: #{poswise_ffn.1} parent=1 // pred_region
      _
    $region29: #{poswise_ffn.1} parent=1 // pred_fallthru
      _
    // Predicated region
    $region30: #{poswise_ffn.1} parent=1 // pred_check
      _
    $region31: #{poswise_ffn.1} parent=1 // pred_check_branch
      %73 = sbr.rel (0) target = $region33
    $region32: #{poswise_ffn.1} parent=1 // pred_region
      %75 = dma.done [#allocation3], 512
    $region33: #{poswise_ffn.1} parent=1 // pred_fallthru
      _
    // Predicated region
    $region34: #{poswise_ffn.1} parent=1 // pred_check
      _
    $region35: #{poswise_ffn.1} parent=1 // pred_check_branch
      %77 = sbr.rel (0) target = $region37
    $region36: #{poswise_ffn.1} parent=1 // pred_region
      %79 = dma.done [#allocation6], 4096
    $region37: #{poswise_ffn.1} parent=1 // pred_fallthru
      _
    // Predicated region
    $region38: #{poswise_ffn.1} parent=1 // pred_check
      _
    $region39: #{poswise_ffn.1} parent=1 // pred_check_branch
      %81 = sbr.rel (0) target = $region41
    $region40: #{poswise_ffn.1} parent=1 // pred_region
      %83 = dma.done [#allocation6], 64
    $region41: #{poswise_ffn.1} parent=1 // pred_fallthru
      _
    // Predicated region
    $region42: #{poswise_ffn.1} parent=1 // pred_check
      _
    $region43: #{poswise_ffn.1} parent=1 // pred_check_branch
      %85 = sbr.rel (0) target = $region45
    $region44: #{poswise_ffn.1} parent=1 // pred_region
      %87 = dma.done [#allocation9], 4096
    $region45: #{poswise_ffn.1} parent=1 // pred_fallthru
      _
    %v88 = vld [vmem:[#allocation2] sm:$0xff]
    %v89 = vld [vmem:[#allocation2 + $0x8] sm:$0xff]
    %v90 = vld [vmem:[#allocation2 + $0x10] sm:$0xff]
    %v91 = vld [vmem:[#allocation2 + $0x18] sm:$0xff]
    %v92 = vpack.c.bf16 %v89, %v88
    %v93 = vpack.c.bf16 %v91, %v90
    %v94 = vld [vmem:[#allocation5] sm:$0xff]
    %v95 = vld [vmem:[#allocation5 + $0x8] sm:$0xff]
    %v96 = vld [vmem:[#allocation5 + $0x10] sm:$0xff]
    %v97 = vld [vmem:[#allocation5 + $0x18] sm:$0xff]
    %v98 = vld [vmem:[#allocation5 + $0x20] sm:$0xff]
    %v99 = vld [vmem:[#allocation5 + $0x28] sm:$0xff]
    %v100 = vld [vmem:[#allocation5 + $0x30] sm:$0xff]
    %v101 = vld [vmem:[#allocation5 + $0x38] sm:$0xff]
    %v102 = vld [vmem:[#allocation5 + $0x40] sm:$0xff]
    %v103 = vld [vmem:[#allocation5 + $0x48] sm:$0xff]
    %v104 = vld [vmem:[#allocation5 + $0x50] sm:$0xff]
    %v105 = vld [vmem:[#allocation5 + $0x58] sm:$0xff]
    %v106 = vld [vmem:[#allocation5 + $0x60] sm:$0xff]
    %v107 = vld [vmem:[#allocation5 + $0x68] sm:$0xff]
    %v108 = vld [vmem:[#allocation5 + $0x70] sm:$0xff]
    %v109 = vld [vmem:[#allocation5 + $0x78] sm:$0xff]
    %v110 = vld [vmem:[#allocation5 + $0x80] sm:$0xff]
    %v111 = vld [vmem:[#allocation5 + $0x88] sm:$0xff]
    %v112 = vld [vmem:[#allocation5 + $0x90] sm:$0xff]
    %v113 = vld [vmem:[#allocation5 + $0x98] sm:$0xff]
    %v114 = vld [vmem:[#allocation5 + $0xa0] sm:$0xff]
    %v115 = vld [vmem:[#allocation5 + $0xa8] sm:$0xff]
    %v116 = vld [vmem:[#allocation5 + $0xb0] sm:$0xff]
    %v117 = vld [vmem:[#allocation5 + $0xb8] sm:$0xff]
    %v118 = vld [vmem:[#allocation5 + $0xc0] sm:$0xff]
    %v119 = vld [vmem:[#allocation5 + $0xc8] sm:$0xff]
    %v120 = vld [vmem:[#allocation5 + $0xd0] sm:$0xff]
    %v121 = vld [vmem:[#allocation5 + $0xd8] sm:$0xff]
    %v122 = vld [vmem:[#allocation5 + $0xe0] sm:$0xff]
    %v123 = vld [vmem:[#allocation5 + $0xe8] sm:$0xff]
    %v124 = vld [vmem:[#allocation5 + $0xf0] sm:$0xff]
    %v125 = vld [vmem:[#allocation5 + $0xf8] sm:$0xff]
    %v126 = vld [vmem:[#allocation7] sm:$0xf]
    %v128 = vperm.slane %v126, 0
    %v129 = vperm.slane %v126, 1
    %v130 = vperm.slane %v126, 2
    %v131 = vperm.slane %v126, 3
    %v168 = vunpack.c.l.b16 %v94
    %v169 = vunpack.c.h.b16 %v94
    %v170 = vunpack.c.l.b16 %v95
    %v171 = vunpack.c.h.b16 %v95
    %v172 = vunpack.c.l.b16 %v96
    %v173 = vunpack.c.h.b16 %v96
    %v174 = vunpack.c.l.b16 %v97
    %v175 = vunpack.c.h.b16 %v97
    %v176 = vunpack.c.l.b16 %v98
    %v177 = vunpack.c.h.b16 %v98
    %v178 = vunpack.c.l.b16 %v99
    %v179 = vunpack.c.h.b16 %v99
    %v180 = vunpack.c.l.b16 %v100
    %v181 = vunpack.c.h.b16 %v100
    %v182 = vunpack.c.l.b16 %v101
    %v183 = vunpack.c.h.b16 %v101
    %v184 = vunpack.c.l.b16 %v102
    %v185 = vunpack.c.h.b16 %v102
    %v186 = vunpack.c.l.b16 %v103
    %v187 = vunpack.c.h.b16 %v103
    %v188 = vunpack.c.l.b16 %v104
    %v189 = vunpack.c.h.b16 %v104
    %v190 = vunpack.c.l.b16 %v105
    %v191 = vunpack.c.h.b16 %v105
    %v192 = vunpack.c.l.b16 %v106
    %v193 = vunpack.c.h.b16 %v106
    %v194 = vunpack.c.l.b16 %v107
    %v195 = vunpack.c.h.b16 %v107
    %v196 = vunpack.c.l.b16 %v108
    %v197 = vunpack.c.h.b16 %v108
    %v198 = vunpack.c.l.b16 %v109
    %v199 = vunpack.c.h.b16 %v109
    %v200 = vunpack.c.l.b16 %v110
    %v201 = vunpack.c.h.b16 %v110
    %v202 = vunpack.c.l.b16 %v111
    %v203 = vunpack.c.h.b16 %v111
    %v204 = vunpack.c.l.b16 %v112
    %v205 = vunpack.c.h.b16 %v112
    %v206 = vunpack.c.l.b16 %v113
    %v207 = vunpack.c.h.b16 %v113
    %v208 = vunpack.c.l.b16 %v114
    %v209 = vunpack.c.h.b16 %v114
    %v210 = vunpack.c.l.b16 %v115
    %v211 = vunpack.c.h.b16 %v115
    %v212 = vunpack.c.l.b16 %v116
    %v213 = vunpack.c.h.b16 %v116
    %v214 = vunpack.c.l.b16 %v117
    %v215 = vunpack.c.h.b16 %v117
    %v216 = vunpack.c.l.b16 %v118
    %v217 = vunpack.c.h.b16 %v118
    %v218 = vunpack.c.l.b16 %v119
    %v219 = vunpack.c.h.b16 %v119
    %v220 = vunpack.c.l.b16 %v120
    %v221 = vunpack.c.h.b16 %v120
    %v222 = vunpack.c.l.b16 %v121
    %v223 = vunpack.c.h.b16 %v121
    %v224 = vunpack.c.l.b16 %v122
    %v225 = vunpack.c.h.b16 %v122
    %v226 = vunpack.c.l.b16 %v123
    %v227 = vunpack.c.h.b16 %v123
    %v228 = vunpack.c.l.b16 %v124
    %v229 = vunpack.c.h.b16 %v124
    %v230 = vunpack.c.l.b16 %v125
    %v231 = vunpack.c.h.b16 %v125
    %v232 = vpack.c.b16 %v172, %v168
    %v233 = vpack.c.b16 %v173, %v169
    %v234 = vpack.c.b16 %v174, %v170
    %v235 = vpack.c.b16 %v175, %v171
    %v236 = vpack.c.b16 %v180, %v176
    %v237 = vpack.c.b16 %v181, %v177
    %v238 = vpack.c.b16 %v182, %v178
    %v239 = vpack.c.b16 %v183, %v179
    %v240 = vpack.c.b16 %v188, %v184
    %v241 = vpack.c.b16 %v189, %v185
    %v242 = vpack.c.b16 %v190, %v186
    %v243 = vpack.c.b16 %v191, %v187
    %v244 = vpack.c.b16 %v196, %v192
    %v245 = vpack.c.b16 %v197, %v193
    %v246 = vpack.c.b16 %v198, %v194
    %v247 = vpack.c.b16 %v199, %v195
    %v248 = vpack.c.b16 %v204, %v200
    %v249 = vpack.c.b16 %v205, %v201
    %v250 = vpack.c.b16 %v206, %v202
    %v251 = vpack.c.b16 %v207, %v203
    %v252 = vpack.c.b16 %v212, %v208
    %v253 = vpack.c.b16 %v213, %v209
    %v254 = vpack.c.b16 %v214, %v210
    %v255 = vpack.c.b16 %v215, %v211
    %v256 = vpack.c.b16 %v220, %v216
    %v257 = vpack.c.b16 %v221, %v217
    %v258 = vpack.c.b16 %v222, %v218
    %v259 = vpack.c.b16 %v223, %v219
    %v260 = vpack.c.b16 %v228, %v224
    %v261 = vpack.c.b16 %v229, %v225
    %v262 = vpack.c.b16 %v230, %v226
    %v263 = vpack.c.b16 %v231, %v227
    %296 = vmatpush.bf16.msra.mxu0 %v260
    %297 = vmatpush.bf16.msra.mxu0 %v256
    %298 = vmatpush.bf16.msra.mxu0 %v252
    %299 = vmatpush.bf16.msra.mxu0 %v248
    %300 = vmatpush.bf16.msra.mxu0 %v244
    %301 = vmatpush.bf16.msra.mxu0 %v240
    %302 = vmatpush.bf16.msra.mxu0 %v236
    %303 = vmatpush.bf16.msra.mxu0 %v232
    %304 = vmatmul.bf16.gmra.mxu0 %v92
    %v305 = vpop.f32.mrf.mxu0
    %v306 = vadd.f32 %v128, %v305
    %v307 = vpop.f32.mrf.mxu0
    %v308 = vadd.f32 %v128, %v307
    %309 = vmatmul.bf16.gmra.mxu0 %v93
    %v310 = vpop.f32.mrf.mxu0
    %v311 = vadd.f32 %v128, %v310
    %v312 = vpop.f32.mrf.mxu0
    %v313 = vadd.f32 %v128, %v312
    %314 = vdwg.mxu0
    %315 = vmatpush.bf16.msra.mxu0 %v261
    %316 = vmatpush.bf16.msra.mxu0 %v257
    %317 = vmatpush.bf16.msra.mxu0 %v253
    %318 = vmatpush.bf16.msra.mxu0 %v249
    %319 = vmatpush.bf16.msra.mxu0 %v245
    %320 = vmatpush.bf16.msra.mxu0 %v241
    %321 = vmatpush.bf16.msra.mxu0 %v237
    %322 = vmatpush.bf16.msra.mxu0 %v233
    %323 = vmatmul.bf16.gmra.mxu0 %v92
    %v324 = vpop.f32.mrf.mxu0
    %v325 = vadd.f32 %v129, %v324
    %v326 = vpop.f32.mrf.mxu0
    %v327 = vadd.f32 %v129, %v326
    %328 = vmatmul.bf16.gmra.mxu0 %v93
    %v329 = vpop.f32.mrf.mxu0
    %v330 = vadd.f32 %v129, %v329
    %v331 = vpop.f32.mrf.mxu0
    %v332 = vadd.f32 %v129, %v331
    %333 = vdwg.mxu0
    %334 = vmatpush.bf16.msra.mxu0 %v262
    %335 = vmatpush.bf16.msra.mxu0 %v258
    %336 = vmatpush.bf16.msra.mxu0 %v254
    %337 = vmatpush.bf16.msra.mxu0 %v250
    %338 = vmatpush.bf16.msra.mxu0 %v246
    %339 = vmatpush.bf16.msra.mxu0 %v242
    %340 = vmatpush.bf16.msra.mxu0 %v238
    %341 = vmatpush.bf16.msra.mxu0 %v234
    %342 = vmatmul.bf16.gmra.mxu0 %v92
    %v343 = vpop.f32.mrf.mxu0
    %v344 = vadd.f32 %v130, %v343
    %v345 = vpop.f32.mrf.mxu0
    %v346 = vadd.f32 %v130, %v345
    %347 = vmatmul.bf16.gmra.mxu0 %v93
    %v348 = vpop.f32.mrf.mxu0
    %v349 = vadd.f32 %v130, %v348
    %v350 = vpop.f32.mrf.mxu0
    %v351 = vadd.f32 %v130, %v350
    %352 = vdwg.mxu0
    %353 = vmatpush.bf16.msra.mxu0 %v263
    %354 = vmatpush.bf16.msra.mxu0 %v259
    %355 = vmatpush.bf16.msra.mxu0 %v255
    %356 = vmatpush.bf16.msra.mxu0 %v251
    %357 = vmatpush.bf16.msra.mxu0 %v247
    %358 = vmatpush.bf16.msra.mxu0 %v243
    %359 = vmatpush.bf16.msra.mxu0 %v239
    %360 = vmatpush.bf16.msra.mxu0 %v235
    %361 = vmatmul.bf16.gmra.mxu0 %v92
    %v362 = vpop.f32.mrf.mxu0
    %v363 = vadd.f32 %v131, %v362
    %v364 = vpop.f32.mrf.mxu0
    %v365 = vadd.f32 %v131, %v364
    %366 = vmatmul.bf16.gmra.mxu0 %v93
    %v367 = vpop.f32.mrf.mxu0
    %v368 = vadd.f32 %v131, %v367
    %v369 = vpop.f32.mrf.mxu0
    %v370 = vadd.f32 %v131, %v369
    %371 = vdwg.mxu0
    %v372 = vmax.f32 %v306, 0.0
    %v373 = vmax.f32 %v325, 0.0
    %v374 = vmax.f32 %v344, 0.0
    %v375 = vmax.f32 %v363, 0.0
    %v376 = vmax.f32 %v308, 0.0
    %v377 = vmax.f32 %v327, 0.0
    %v378 = vmax.f32 %v346, 0.0
    %v379 = vmax.f32 %v365, 0.0
    %v380 = vmax.f32 %v311, 0.0
    %v381 = vmax.f32 %v330, 0.0
    %v382 = vmax.f32 %v349, 0.0
    %v383 = vmax.f32 %v368, 0.0
    %v384 = vmax.f32 %v313, 0.0
    %v385 = vmax.f32 %v332, 0.0
    %v386 = vmax.f32 %v351, 0.0
    %v387 = vmax.f32 %v370, 0.0
    %v388 = vpack.c.bf16 %v376, %v372
    %v389 = vpack.c.bf16 %v377, %v373
    %v390 = vpack.c.bf16 %v378, %v374
    %v391 = vpack.c.bf16 %v379, %v375
    %v392 = vpack.c.bf16 %v384, %v380
    %v393 = vpack.c.bf16 %v385, %v381
    %v394 = vpack.c.bf16 %v386, %v382
    %v395 = vpack.c.bf16 %v387, %v383
    %v396 = vld [vmem:[#allocation8] sm:$0xf]
    %v397 = vld [vmem:[#allocation8 + $0x4] sm:$0xf]
    %v398 = vld [vmem:[#allocation8 + $0x8] sm:$0xf]
    %v399 = vld [vmem:[#allocation8 + $0xc] sm:$0xf]
    %v400 = vld [vmem:[#allocation8 + $0x10] sm:$0xf]
    %v401 = vld [vmem:[#allocation8 + $0x14] sm:$0xf]
    %v402 = vld [vmem:[#allocation8 + $0x18] sm:$0xf]
    %v403 = vld [vmem:[#allocation8 + $0x1c] sm:$0xf]
    %v404 = vld [vmem:[#allocation8 + $0x20] sm:$0xf]
    %v405 = vld [vmem:[#allocation8 + $0x24] sm:$0xf]
    %v406 = vld [vmem:[#allocation8 + $0x28] sm:$0xf]
    %v407 = vld [vmem:[#allocation8 + $0x2c] sm:$0xf]
    %v408 = vld [vmem:[#allocation8 + $0x30] sm:$0xf]
    %v409 = vld [vmem:[#allocation8 + $0x34] sm:$0xf]
    %v410 = vld [vmem:[#allocation8 + $0x38] sm:$0xf]
    %v411 = vld [vmem:[#allocation8 + $0x3c] sm:$0xf]
    %v412 = vld [vmem:[#allocation8 + $0x40] sm:$0xf]
    %v413 = vld [vmem:[#allocation8 + $0x44] sm:$0xf]
    %v414 = vld [vmem:[#allocation8 + $0x48] sm:$0xf]
    %v415 = vld [vmem:[#allocation8 + $0x4c] sm:$0xf]
    %v416 = vld [vmem:[#allocation8 + $0x50] sm:$0xf]
    %v417 = vld [vmem:[#allocation8 + $0x54] sm:$0xf]
    %v418 = vld [vmem:[#allocation8 + $0x58] sm:$0xf]
    %v419 = vld [vmem:[#allocation8 + $0x5c] sm:$0xf]
    %v420 = vld [vmem:[#allocation8 + $0x60] sm:$0xf]
    %v421 = vld [vmem:[#allocation8 + $0x64] sm:$0xf]
    %v422 = vld [vmem:[#allocation8 + $0x68] sm:$0xf]
    %v423 = vld [vmem:[#allocation8 + $0x6c] sm:$0xf]
    %v424 = vld [vmem:[#allocation8 + $0x70] sm:$0xf]
    %v425 = vld [vmem:[#allocation8 + $0x74] sm:$0xf]
    %v426 = vld [vmem:[#allocation8 + $0x78] sm:$0xf]
    %v427 = vld [vmem:[#allocation8 + $0x7c] sm:$0xf]
    %v428 = vld [vmem:[#allocation8 + $0x80] sm:$0xf]
    %v429 = vld [vmem:[#allocation8 + $0x84] sm:$0xf]
    %v430 = vld [vmem:[#allocation8 + $0x88] sm:$0xf]
    %v431 = vld [vmem:[#allocation8 + $0x8c] sm:$0xf]
    %v432 = vld [vmem:[#allocation8 + $0x90] sm:$0xf]
    %v433 = vld [vmem:[#allocation8 + $0x94] sm:$0xf]
    %v434 = vld [vmem:[#allocation8 + $0x98] sm:$0xf]
    %v435 = vld [vmem:[#allocation8 + $0x9c] sm:$0xf]
    %v436 = vld [vmem:[#allocation8 + $0xa0] sm:$0xf]
    %v437 = vld [vmem:[#allocation8 + $0xa4] sm:$0xf]
    %v438 = vld [vmem:[#allocation8 + $0xa8] sm:$0xf]
    %v439 = vld [vmem:[#allocation8 + $0xac] sm:$0xf]
    %v440 = vld [vmem:[#allocation8 + $0xb0] sm:$0xf]
    %v441 = vld [vmem:[#allocation8 + $0xb4] sm:$0xf]
    %v442 = vld [vmem:[#allocation8 + $0xb8] sm:$0xf]
    %v443 = vld [vmem:[#allocation8 + $0xbc] sm:$0xf]
    %v444 = vld [vmem:[#allocation8 + $0xc0] sm:$0xf]
    %v445 = vld [vmem:[#allocation8 + $0xc4] sm:$0xf]
    %v446 = vld [vmem:[#allocation8 + $0xc8] sm:$0xf]
    %v447 = vld [vmem:[#allocation8 + $0xcc] sm:$0xf]
    %v448 = vld [vmem:[#allocation8 + $0xd0] sm:$0xf]
    %v449 = vld [vmem:[#allocation8 + $0xd4] sm:$0xf]
    %v450 = vld [vmem:[#allocation8 + $0xd8] sm:$0xf]
    %v451 = vld [vmem:[#allocation8 + $0xdc] sm:$0xf]
    %v452 = vld [vmem:[#allocation8 + $0xe0] sm:$0xf]
    %v453 = vld [vmem:[#allocation8 + $0xe4] sm:$0xf]
    %v454 = vld [vmem:[#allocation8 + $0xe8] sm:$0xf]
    %v455 = vld [vmem:[#allocation8 + $0xec] sm:$0xf]
    %v456 = vld [vmem:[#allocation8 + $0xf0] sm:$0xf]
    %v457 = vld [vmem:[#allocation8 + $0xf4] sm:$0xf]
    %v458 = vld [vmem:[#allocation8 + $0xf8] sm:$0xf]
    %v459 = vld [vmem:[#allocation8 + $0xfc] sm:$0xf]
    %v460 = vld [vmem:[%s4] sm:$0x1]
    %v462 = vperm.slane %v460, 0
    %v528 = vunpack.c.l.b16 %v396
    %v529 = vunpack.c.l.b16 %v397
    %v530 = vunpack.c.l.b16 %v398
    %v531 = vunpack.c.l.b16 %v399
    %v532 = vunpack.c.l.b16 %v400
    %v533 = vunpack.c.l.b16 %v401
    %v534 = vunpack.c.l.b16 %v402
    %v535 = vunpack.c.l.b16 %v403
    %v536 = vunpack.c.l.b16 %v404
    %v537 = vunpack.c.l.b16 %v405
    %v538 = vunpack.c.l.b16 %v406
    %v539 = vunpack.c.l.b16 %v407
    %v540 = vunpack.c.l.b16 %v408
    %v541 = vunpack.c.l.b16 %v409
    %v542 = vunpack.c.l.b16 %v410
    %v543 = vunpack.c.l.b16 %v411
    %v544 = vunpack.c.l.b16 %v412
    %v545 = vunpack.c.l.b16 %v413
    %v546 = vunpack.c.l.b16 %v414
    %v547 = vunpack.c.l.b16 %v415
    %v548 = vunpack.c.l.b16 %v416
    %v549 = vunpack.c.l.b16 %v417
    %v550 = vunpack.c.l.b16 %v418
    %v551 = vunpack.c.l.b16 %v419
    %v552 = vunpack.c.l.b16 %v420
    %v553 = vunpack.c.l.b16 %v421
    %v554 = vunpack.c.l.b16 %v422
    %v555 = vunpack.c.l.b16 %v423
    %v556 = vunpack.c.l.b16 %v424
    %v557 = vunpack.c.l.b16 %v425
    %v558 = vunpack.c.l.b16 %v426
    %v559 = vunpack.c.l.b16 %v427
    %v560 = vunpack.c.l.b16 %v428
    %v561 = vunpack.c.l.b16 %v429
    %v562 = vunpack.c.l.b16 %v430
    %v563 = vunpack.c.l.b16 %v431
    %v564 = vunpack.c.l.b16 %v432
    %v565 = vunpack.c.l.b16 %v433
    %v566 = vunpack.c.l.b16 %v434
    %v567 = vunpack.c.l.b16 %v435
    %v568 = vunpack.c.l.b16 %v436
    %v569 = vunpack.c.l.b16 %v437
    %v570 = vunpack.c.l.b16 %v438
    %v571 = vunpack.c.l.b16 %v439
    %v572 = vunpack.c.l.b16 %v440
    %v573 = vunpack.c.l.b16 %v441
    %v574 = vunpack.c.l.b16 %v442
    %v575 = vunpack.c.l.b16 %v443
    %v576 = vunpack.c.l.b16 %v444
    %v577 = vunpack.c.l.b16 %v445
    %v578 = vunpack.c.l.b16 %v446
    %v579 = vunpack.c.l.b16 %v447
    %v580 = vunpack.c.l.b16 %v448
    %v581 = vunpack.c.l.b16 %v449
    %v582 = vunpack.c.l.b16 %v450
    %v583 = vunpack.c.l.b16 %v451
    %v584 = vunpack.c.l.b16 %v452
    %v585 = vunpack.c.l.b16 %v453
    %v586 = vunpack.c.l.b16 %v454
    %v587 = vunpack.c.l.b16 %v455
    %v588 = vunpack.c.l.b16 %v456
    %v589 = vunpack.c.l.b16 %v457
    %v590 = vunpack.c.l.b16 %v458
    %v591 = vunpack.c.l.b16 %v459
    %v592 = vpack.c.b16 %v529, %v528
    %v593 = vpack.c.b16 %v531, %v530
    %v594 = vpack.c.b16 %v533, %v532
    %v595 = vpack.c.b16 %v535, %v534
    %v596 = vpack.c.b16 %v537, %v536
    %v597 = vpack.c.b16 %v539, %v538
    %v598 = vpack.c.b16 %v541, %v540
    %v599 = vpack.c.b16 %v543, %v542
    %v600 = vpack.c.b16 %v545, %v544
    %v601 = vpack.c.b16 %v547, %v546
    %v602 = vpack.c.b16 %v549, %v548
    %v603 = vpack.c.b16 %v551, %v550
    %v604 = vpack.c.b16 %v553, %v552
    %v605 = vpack.c.b16 %v555, %v554
    %v606 = vpack.c.b16 %v557, %v556
    %v607 = vpack.c.b16 %v559, %v558
    %v608 = vpack.c.b16 %v561, %v560
    %v609 = vpack.c.b16 %v563, %v562
    %v610 = vpack.c.b16 %v565, %v564
    %v611 = vpack.c.b16 %v567, %v566
    %v612 = vpack.c.b16 %v569, %v568
    %v613 = vpack.c.b16 %v571, %v570
    %v614 = vpack.c.b16 %v573, %v572
    %v615 = vpack.c.b16 %v575, %v574
    %v616 = vpack.c.b16 %v577, %v576
    %v617 = vpack.c.b16 %v579, %v578
    %v618 = vpack.c.b16 %v581, %v580
    %v619 = vpack.c.b16 %v583, %v582
    %v620 = vpack.c.b16 %v585, %v584
    %v621 = vpack.c.b16 %v587, %v586
    %v622 = vpack.c.b16 %v589, %v588
    %v623 = vpack.c.b16 %v591, %v590
    %656 = vmatpush.bf16.msra.mxu0 %v599
    %657 = vmatpush.bf16.msra.mxu0 %v598
    %658 = vmatpush.bf16.msra.mxu0 %v597
    %659 = vmatpush.bf16.msra.mxu0 %v596
    %660 = vmatpush.bf16.msra.mxu0 %v595
    %661 = vmatpush.bf16.msra.mxu0 %v594
    %662 = vmatpush.bf16.msra.mxu0 %v593
    %663 = vmatpush.bf16.msra.mxu0 %v592
    %664 = vmatmul.bf16.gmra.mxu0 %v388
    %v665 = vpop.f32.mrf.mxu0
    %v666 = vadd.f32 %v462, %v665
    %v667 = vpop.f32.mrf.mxu0
    %v668 = vadd.f32 %v462, %v667
    %669 = vmatmul.bf16.gmra.mxu0 %v392
    %v670 = vpop.f32.mrf.mxu0
    %v671 = vadd.f32 %v462, %v670
    %v672 = vpop.f32.mrf.mxu0
    %v673 = vadd.f32 %v462, %v672
    %674 = vdwg.mxu0
    %675 = vmatpush.bf16.msra.mxu0 %v607
    %676 = vmatpush.bf16.msra.mxu0 %v606
    %677 = vmatpush.bf16.msra.mxu0 %v605
    %678 = vmatpush.bf16.msra.mxu0 %v604
    %679 = vmatpush.bf16.msra.mxu0 %v603
    %680 = vmatpush.bf16.msra.mxu0 %v602
    %681 = vmatpush.bf16.msra.mxu0 %v601
    %682 = vmatpush.bf16.msra.mxu0 %v600
    %683 = vmatmul.bf16.gmra.mxu0 %v389
    %v684 = vpop.f32.mrf.mxu0
    %v685 = vadd.f32 %v666, %v684
    %v686 = vpop.f32.mrf.mxu0
    %v687 = vadd.f32 %v668, %v686
    %688 = vmatmul.bf16.gmra.mxu0 %v393
    %v689 = vpop.f32.mrf.mxu0
    %v690 = vadd.f32 %v671, %v689
    %v691 = vpop.f32.mrf.mxu0
    %v692 = vadd.f32 %v673, %v691
    %693 = vdwg.mxu0
    %694 = vmatpush.bf16.msra.mxu0 %v615
    %695 = vmatpush.bf16.msra.mxu0 %v614
    %696 = vmatpush.bf16.msra.mxu0 %v613
    %697 = vmatpush.bf16.msra.mxu0 %v612
    %698 = vmatpush.bf16.msra.mxu0 %v611
    %699 = vmatpush.bf16.msra.mxu0 %v610
    %700 = vmatpush.bf16.msra.mxu0 %v609
    %701 = vmatpush.bf16.msra.mxu0 %v608
    %702 = vmatmul.bf16.gmra.mxu0 %v390
    %v703 = vpop.f32.mrf.mxu0
    %v704 = vadd.f32 %v685, %v703
    %v705 = vpop.f32.mrf.mxu0
    %v706 = vadd.f32 %v687, %v705
    %707 = vmatmul.bf16.gmra.mxu0 %v394
    %v708 = vpop.f32.mrf.mxu0
    %v709 = vadd.f32 %v690, %v708
    %v710 = vpop.f32.mrf.mxu0
    %v711 = vadd.f32 %v692, %v710
    %712 = vdwg.mxu0
    %713 = vmatpush.bf16.msra.mxu0 %v623
    %714 = vmatpush.bf16.msra.mxu0 %v622
    %715 = vmatpush.bf16.msra.mxu0 %v621
    %716 = vmatpush.bf16.msra.mxu0 %v620
    %717 = vmatpush.bf16.msra.mxu0 %v619
    %718 = vmatpush.bf16.msra.mxu0 %v618
    %719 = vmatpush.bf16.msra.mxu0 %v617
    %720 = vmatpush.bf16.msra.mxu0 %v616
    %721 = vmatmul.bf16.gmra.mxu0 %v391
    %v722 = vpop.f32.mrf.mxu0
    %v723 = vadd.f32 %v704, %v722
    %v724 = vpop.f32.mrf.mxu0
    %v725 = vadd.f32 %v706, %v724
    %726 = vmatmul.bf16.gmra.mxu0 %v395
    %v727 = vpop.f32.mrf.mxu0
    %v728 = vadd.f32 %v709, %v727
    %v729 = vpop.f32.mrf.mxu0
    %v730 = vadd.f32 %v711, %v729
    %731 = vdwg.mxu0
    %v732 = vadd.f32 %v723, %v88
    %v733 = vadd.f32 %v725, %v89
    %v734 = vadd.f32 %v728, %v90
    %v735 = vadd.f32 %v730, %v91
    %736 = vadd.xlane.f32.xlu0 %v732
    %v737 = vpop.xlane.xlu0 %736
    %738 = vadd.xlane.f32.xlu0 %v733
    %v739 = vpop.xlane.xlu0 %738
    %740 = vadd.xlane.f32.xlu0 %v734
    %v741 = vpop.xlane.xlu0 %740
    %742 = vadd.xlane.f32.xlu0 %v735
    %v743 = vpop.xlane.xlu0 %742
    %v744 = vmul.f32 %v737, 0.0078125
    %v745 = vmul.f32 %v739, 0.0078125
    %v746 = vmul.f32 %v741, 0.0078125
    %v747 = vmul.f32 %v743, 0.0078125
    %v748 = vmul.f32 %v732, %v732
    %v749 = vmul.f32 %v733, %v733
    %v750 = vmul.f32 %v734, %v734
    %v751 = vmul.f32 %v735, %v735
    %752 = vadd.xlane.f32.xlu0 %v748
    %v753 = vpop.xlane.xlu0 %752
    %754 = vadd.xlane.f32.xlu0 %v749
    %v755 = vpop.xlane.xlu0 %754
    %756 = vadd.xlane.f32.xlu0 %v750
    %v757 = vpop.xlane.xlu0 %756
    %758 = vadd.xlane.f32.xlu0 %v751
    %v759 = vpop.xlane.xlu0 %758
    %v760 = vmul.f32 %v753, 0.0078125
    %v761 = vmul.f32 %v755, 0.0078125
    %v762 = vmul.f32 %v757, 0.0078125
    %v763 = vmul.f32 %v759, 0.0078125
    %v764 = vmul.f32 %v744, %v744
    %v765 = vmul.f32 %v745, %v745
    %v766 = vmul.f32 %v746, %v746
    %v767 = vmul.f32 %v747, %v747
    %v768 = vsub.f32 %v760, %v764
    %v769 = vsub.f32 %v761, %v765
    %v770 = vsub.f32 %v762, %v766
    %v771 = vsub.f32 %v763, %v767
    %v772 = vsub.f32 %v732, %v744
    %v773 = vsub.f32 %v733, %v745
    %v774 = vsub.f32 %v734, %v746
    %v775 = vsub.f32 %v735, %v747
    %v776 = vadd.f32 %v768, 1e-05
    %v777 = vadd.f32 %v769, 1e-05
    %v778 = vadd.f32 %v770, 1e-05
    %v779 = vadd.f32 %v771, 1e-05
    %v780 = vrsqrt.pop %v776
    %v781 = vmul.f32 %v780, %v776
    %v782 = vmul.f32 %v781, %v780
    %v783 = vmul.f32 0.5, %v782
    %v784 = vsub.f32 1.5, %v783
    %v785 = vmul.f32 %v780, %v784
    %vm786 = vweird.f32 %v776
    %vm787 = vweird.f32 %v780
    %vm788 = vmor %vm786, %vm787
    %v789 = vsel %vm788, %v780, %v785
    %v790 = vrsqrt.pop %v777
    %v791 = vmul.f32 %v790, %v777
    %v792 = vmul.f32 %v791, %v790
    %v793 = vmul.f32 0.5, %v792
    %v794 = vsub.f32 1.5, %v793
    %v795 = vmul.f32 %v790, %v794
    %vm796 = vweird.f32 %v777
    %vm797 = vweird.f32 %v790
    %vm798 = vmor %vm796, %vm797
    %v799 = vsel %vm798, %v790, %v795
    %v800 = vrsqrt.pop %v778
    %v801 = vmul.f32 %v800, %v778
    %v802 = vmul.f32 %v801, %v800
    %v803 = vmul.f32 0.5, %v802
    %v804 = vsub.f32 1.5, %v803
    %v805 = vmul.f32 %v800, %v804
    %vm806 = vweird.f32 %v778
    %vm807 = vweird.f32 %v800
    %vm808 = vmor %vm806, %vm807
    %v809 = vsel %vm808, %v800, %v805
    %v810 = vrsqrt.pop %v779
    %v811 = vmul.f32 %v810, %v779
    %v812 = vmul.f32 %v811, %v810
    %v813 = vmul.f32 0.5, %v812
    %v814 = vsub.f32 1.5, %v813
    %v815 = vmul.f32 %v810, %v814
    %vm816 = vweird.f32 %v779
    %vm817 = vweird.f32 %v810
    %vm818 = vmor %vm816, %vm817
    %v819 = vsel %vm818, %v810, %v815
    %v820 = vmul.f32 %v772, %v789
    %v821 = vmul.f32 %v773, %v799
    %v822 = vmul.f32 %v774, %v809
    %v823 = vmul.f32 %v775, %v819
    %v824 = vld [vmem:[%s5] sm:$0x1]
    %v826 = vperm.slane %v824, 0
    %v828 = vmul.f32 %v820, %v826
    %v829 = vmul.f32 %v821, %v826
    %v830 = vmul.f32 %v822, %v826
    %v831 = vmul.f32 %v823, %v826
    %v832 = vld [vmem:[%s6] sm:$0x1]
    %v834 = vperm.slane %v832, 0
    %v836 = vadd.f32 %v828, %v834
    %v837 = vadd.f32 %v829, %v834
    %v838 = vadd.f32 %v830, %v834
    %v839 = vadd.f32 %v831, %v834
    %840 = vst [vmem:[#allocation10] sm:$0xff] %v836
    %841 = vst [vmem:[#allocation10 + $0x8] sm:$0xff] %v837
    %842 = vst [vmem:[#allocation10 + $0x10] sm:$0xff] %v838
    %843 = vst [vmem:[#allocation10 + $0x18] sm:$0xff] %v839
    // Predicated region
    $region46: #{poswise_ffn.1} parent=1 // pred_check
      _
    $region47: #{poswise_ffn.1} parent=1 // pred_check_branch
      %845 = sbr.rel (0) target = $region49
    $region48: #{poswise_ffn.1} parent=1 // pred_region
      %847 = vsyncadd [#allocation4], 0
      %s848 = sshll.u32 [#allocation10], 4
      %s849 = int_to_ptr.vmem [resolvable:$true] %s848
      %s850 = sshll.u32 %s7, 4
      %s851 = int_to_ptr.hbm [resolvable:$true] %s850
      %856 = dma.vmem_to_hbm [thread:$0]  %s849, 512, %s851, [#allocation4], 128, 128, 8
    $region49: #{poswise_ffn.1} parent=1 // pred_fallthru
      _
    // Predicated region
    $region50: #{poswise_ffn.1} parent=1 // pred_check
      _
    $region51: #{poswise_ffn.1} parent=1 // pred_check_branch
      %858 = sbr.rel (0) target = $region53
    $region52: #{poswise_ffn.1} parent=1 // pred_region
      %860 = dma.done [#allocation4], 512
    $region53: #{poswise_ffn.1} parent=1 // pred_fallthru
      _
    %861 = vsyncpa [#allocation3], 1
    %862 = vsyncpa [#allocation6], 1
    %863 = vsyncpa [#allocation9], 1
    %864 = vsyncpa [#allocation4], 1

</llo_original>
